<compile_context>
chip_gen: v6e
topology: v6e:2x2x1
jax: 0.10.0
libtpu: 0.0.40
codegen_flags: <defaults>
</compile_context>

<pallas_src>
import functools

import jax
import jax.numpy as jnp
import numpy as np
from jax.experimental import pallas as pl
from jax.experimental.pallas import tpu as pltpu

EPS = 1e-6
LANE = 128            # vreg lane width
_PAD_LOGIT = -1e4     # sigmoid(-1e4) == 0 and BCE(-1e4, target=0) == 0 exactly in f32


def _sublane_multiple(dtype) -> int:
    """Native sublane packing for the dtype: f32 -> 8, bf16 -> 16, int8/fp8 -> 32."""
    return {4: 8, 2: 16, 1: 32}.get(jnp.dtype(dtype).itemsize, 8)


def _choose_rows_per_block(rows, bytes_per_row, sub, max_block_bytes):
    """Rows-of-128 per block, purely from the VMEM budget (divisor-free).

    If everything fits, TR == rows (full-dim block, any value is layout-legal).
    Otherwise TR is the largest multiple of `sub` within budget and the last
    (partial) block is masked inside the kernel.
    """
    cap = max_block_bytes // max(bytes_per_row, 1)
    tr_cap = max(sub, (cap // sub) * sub)
    return rows if rows <= tr_cap else tr_cap


def _bce_dice_kernel(x_ref, t_ref, inter_ref, denom_ref, bce_ref, *,
                     rows, rows_per_block, binary_targets):
    """Grid = (N, J), both axes parallel.

    Blocks: x/t (C, TR, 128); each step writes its own (1, C, 128) partials.
    """
    x = x_ref[...].astype(jnp.float32)          # logits  (C, TR, 128)
    t = t_ref[...].astype(jnp.float32)          # targets (C, TR, 128)

    # Ragged last row-block: replace undefined tail rows with exactly-neutral values
    # BEFORE any exp/log work (a stray NaN/Inf in the tail must never reach the sums).
    if rows % rows_per_block != 0:
        j = pl.program_id(1)
        row = jax.lax.broadcasted_iota(jnp.int32, x.shape, dimension=1)
        valid = (j * rows_per_block + row) < rows
        x = jnp.where(valid, x, _PAD_LOGIT)
        t = jnp.where(valid, t, 0.0)

    # Shared transcendental work: one exp feeds both the sigmoid and the BCE log term.
    e = jnp.exp(-jnp.abs(x))                    # exp(-|x|)           (EUP)
    d = 1.0 + e
    r = pl.reciprocal(d, approx=True)           # ~1/(1+e)            (EUP, approx)
    r = r * (2.0 - d * r)                       # one Newton step -> ~f32-exact
    p = jnp.where(x >= 0.0, r, e * r)           # sigmoid(x)          (VPU select)

    tt = t if binary_targets else t * t         # 0/1 masks: t*t == t

    # Per-channel, lane-wide partials (only a sublane reduce; store is 128-lane dense).
    inter_ref[...] = jnp.sum(p * t, axis=1)[None]           # (1, C, 128)
    denom_ref[...] = jnp.sum(p * p + tt, axis=1)[None]

    # Numerically-stable BCE-with-logits: max(x, 0) - x*t + log1p(exp(-|x|)).
    bce = jnp.maximum(x, 0.0) - x * t + jnp.log1p(e)
    bce_ref[...] = jnp.sum(bce, axis=1)[None]


def bce_dice_loss(logits, target, *, alpha, beta, binary_targets=False,
                  max_block_bytes=4 * 1024 * 1024):
    """alpha * BCEWithLogits(logits, target) + beta * (1 - mean per-channel dice(sigmoid)).

    logits / target: (N, C, *spatial), float32 or bfloat16. Returns scalar f32 loss.
    """
    assert logits.shape == target.shape
    N, C = logits.shape[0], logits.shape[1]
    HW = int(np.prod(logits.shape[2:]))

    sub = max(_sublane_multiple(logits.dtype), _sublane_multiple(target.dtype))
    bytes_per_row = C * LANE * (jnp.dtype(logits.dtype).itemsize
                                + jnp.dtype(target.dtype).itemsize)

    R = pl.cdiv(HW, LANE)                       # rows of 128 lanes
    TR = _choose_rows_per_block(R, bytes_per_row, sub, max_block_bytes)
    J = pl.cdiv(R, TR)

    # Free reshape of the contiguous NC(spatial) input (no transpose, no HBM relayout).
    x3 = logits.reshape(N, C, HW)
    t3 = target.reshape(N, C, HW)
    if HW % LANE != 0:
        # Minimal neutral pad only to the next 128-lane boundary (required for the
        # (N, C, R, 128) view).  Row-chunk raggedness never pads — it is masked in-kernel.
        pad = ((0, 0), (0, 0), (0, R * LANE - HW))
        x3 = jnp.pad(x3, pad, constant_values=_PAD_LOGIT)
        t3 = jnp.pad(t3, pad, constant_values=0.0)
    x4 = x3.reshape(N, C, R, LANE)
    t4 = t3.reshape(N, C, R, LANE)

    in_spec = pl.BlockSpec((None, C, TR, LANE), lambda n, j: (n, 0, j, 0))
    out_spec = pl.BlockSpec((None, 1, C, LANE), lambda n, j: (n, j, 0, 0))
    part_shape = jax.ShapeDtypeStruct((N, J, C, LANE), jnp.float32)

    kernel = functools.partial(_bce_dice_kernel, rows=R, rows_per_block=TR,
                               binary_targets=binary_targets)

    inter_p, denom_p, bce_p = pl.pallas_call(
        kernel,
        out_shape=(part_shape, part_shape, part_shape),
        grid_spec=pltpu.PrefetchScalarGridSpec(
            num_scalar_prefetch=0,
            grid=(N, J),
            in_specs=[in_spec, in_spec],
            out_specs=[out_spec, out_spec, out_spec],
        ),
        compiler_params=pltpu.CompilerParams(
            # Every (n, j) block writes its own partial output, so both grid axes are
            # independent -> "parallel" lets v7x shard either axis across its two cores.
            dimension_semantics=("parallel", "parallel"),
            vmem_limit_bytes=32 * 1024 * 1024,
        ),
    )(x4, t4)

    # Tiny finalize in plain JAX on the (N, J, C, 128) partials.
    inter_c = jnp.sum(inter_p, axis=(0, 1, 3))           # (C,)
    denom_c = jnp.sum(denom_p, axis=(0, 1, 3))           # (C,)
    bce_sum = jnp.sum(bce_p)
    dice = 2.0 * inter_c / jnp.maximum(denom_c, EPS)     # == clamp(min=eps)
    dice_loss = 1.0 - jnp.mean(dice)
    bce_mean = bce_sum / float(N * C * HW)               # mean over the real elements only
    return alpha * bce_mean + beta * dice_loss


def _reference_bce_dice(logits, target, alpha, beta):
    """Plain-JAX reference matching the PyTorch BCEDiceLoss semantics."""
    C = logits.shape[1]
    x = jnp.moveaxis(logits, 1, 0).reshape(C, -1).astype(jnp.float32)
    t = jnp.moveaxis(target, 1, 0).reshape(C, -1).astype(jnp.float32)
    bce = jnp.mean(jnp.maximum(x, 0.0) - x * t + jnp.log1p(jnp.exp(-jnp.abs(x))))
    p = jax.nn.sigmoid(x)
    intersect = jnp.sum(p * t, axis=-1)
    denom = jnp.sum(p * p, axis=-1) + jnp.sum(t * t, axis=-1)
    dice = 2.0 * intersect / jnp.clip(denom, EPS, None)
    return alpha * bce + beta * (1.0 - jnp.mean(dice))


def _check(shape, alpha, beta, seed, dtype=jnp.float32, **kwargs):
    key = jax.random.PRNGKey(seed)
    k1, k2 = jax.random.split(key)
    logits = jax.random.normal(k1, shape, dtype=jnp.float32).astype(dtype)
    target = (jax.random.uniform(k2, shape) > 0.5).astype(dtype)
    loss = jax.block_until_ready(
        bce_dice_loss(logits, target, alpha=alpha, beta=beta, **kwargs))
    ref = jax.block_until_ready(_reference_bce_dice(logits, target, alpha, beta))
    assert np.isfinite(float(loss)), loss
    assert np.isclose(float(loss), float(ref), rtol=5e-4, atol=1e-6), (float(loss), float(ref))


if __name__ == "__main__":
    ALPHA, BETA = 0.4, 0.6   # deterministic "module params": BCEDiceLoss(alpha, beta)

    # Main small case (module-consistent shape): one dense block per batch element.
    _check((2, 4, 16, 16), ALPHA, BETA, seed=0)

    # N=1 with a tiny block budget: multi-step row axis + ragged last block masked
    # in-kernel, both grid axes parallel (48*48 = 2304 -> R=18, TR=8, J=3).
    _check((1, 4, 48, 48), ALPHA, BETA, seed=0, max_block_bytes=8 * 1024)

    # bf16 inputs (targets are exact 0/1 in bf16) + lane-ragged spatial size (20*21=420):
    # exercises the minimal 128-lane pad, dtype-aware tiling and the binary_targets trim.
    _check((2, 3, 20, 21), ALPHA, BETA, seed=1, dtype=jnp.bfloat16, binary_targets=True)

    print("KERNEL_OK")
</pallas_src>

<mosaic_0001>
module attributes {stable_mosaic.version = 11 : i64} {
  func.func @_bce_dice_kernel(%arg0: i32, %arg1: i32, %arg2: memref<1x4x2x128xf32, #tpu.memory_space<vmem>>, %arg3: memref<1x4x2x128xf32, #tpu.memory_space<vmem>>, %arg4: memref<1x1x4x128xf32, #tpu.memory_space<vmem>>, %arg5: memref<1x1x4x128xf32, #tpu.memory_space<vmem>>, %arg6: memref<1x1x4x128xf32, #tpu.memory_space<vmem>>) attributes {dimension_semantics = [#tpu.dimension_semantics<parallel>, #tpu.dimension_semantics<parallel>], iteration_bounds = array<i64: 2, 1>, scalar_prefetch = 0 : i64, scratch_operands = 0 : i64, tpu.core_type = #tpu.core_type<tc>, window_params = [{transform_indices = @transform_0, window_bounds = array<i64: 1, 4, 2, 128>}, {transform_indices = @transform_1, window_bounds = array<i64: 1, 4, 2, 128>}, {transform_indices = @transform_2, window_bounds = array<i64: 1, 1, 4, 128>}, {transform_indices = @transform_3, window_bounds = array<i64: 1, 1, 4, 128>}, {transform_indices = @transform_4, window_bounds = array<i64: 1, 1, 4, 128>}]} {
    %c0 = arith.constant 0 : index
    %c0_0 = arith.constant 0 : index
    %c0_1 = arith.constant 0 : index
    %c0_2 = arith.constant 0 : index
    %0 = vector.load %arg2[%c0, %c0_0, %c0_1, %c0_2] : memref<1x4x2x128xf32, #tpu.memory_space<vmem>>, vector<1x4x2x128xf32>
    %1 = vector.shape_cast %0 : vector<1x4x2x128xf32> to vector<4x2x128xf32>
    %c0_3 = arith.constant 0 : index
    %c0_4 = arith.constant 0 : index
    %c0_5 = arith.constant 0 : index
    %c0_6 = arith.constant 0 : index
    %2 = vector.load %arg3[%c0_3, %c0_4, %c0_5, %c0_6] : memref<1x4x2x128xf32, #tpu.memory_space<vmem>>, vector<1x4x2x128xf32>
    %3 = vector.shape_cast %2 : vector<1x4x2x128xf32> to vector<4x2x128xf32>
    %4 = math.absf %1 : vector<4x2x128xf32>
    %cst = arith.constant 0.000000e+00 : f32
    %5 = vector.broadcast %cst : f32 to vector<4x2x128xf32>
    %6 = arith.subf %5, %4 : vector<4x2x128xf32>
    %7 = math.exp %6 : vector<4x2x128xf32>
    %cst_7 = arith.constant 1.000000e+00 : f32
    %8 = vector.broadcast %cst_7 : f32 to vector<4x2x128xf32>
    %9 = arith.addf %8, %7 : vector<4x2x128xf32>
    %10 = tpu.reciprocal %9 {approx = true} : vector<4x2x128xf32> -> vector<4x2x128xf32>
    %11 = arith.mulf %9, %10 : vector<4x2x128xf32>
    %cst_8 = arith.constant 2.000000e+00 : f32
    %12 = vector.broadcast %cst_8 : f32 to vector<4x2x128xf32>
    %13 = arith.subf %12, %11 : vector<4x2x128xf32>
    %14 = arith.mulf %10, %13 : vector<4x2x128xf32>
    %cst_9 = arith.constant 0.000000e+00 : f32
    %15 = vector.broadcast %cst_9 : f32 to vector<4x2x128xf32>
    %16 = arith.cmpf oge, %1, %15 : vector<4x2x128xf32>
    %17 = arith.mulf %7, %14 : vector<4x2x128xf32>
    %18 = arith.select %16, %14, %17 : vector<4x2x128xi1>, vector<4x2x128xf32>
    %19 = arith.mulf %3, %3 : vector<4x2x128xf32>
    %20 = arith.mulf %18, %3 : vector<4x2x128xf32>
    %cst_10 = arith.constant dense<0.000000e+00> : vector<4x128xf32>
    %21 = vector.multi_reduction <add>, %20, %cst_10 [1] : vector<4x2x128xf32> to vector<4x128xf32>
    %22 = vector.shape_cast %21 : vector<4x128xf32> to vector<1x4x128xf32>
    %c0_11 = arith.constant 0 : index
    %c0_12 = arith.constant 0 : index
    %c0_13 = arith.constant 0 : index
    %c0_14 = arith.constant 0 : index
    %23 = vector.load %arg4[%c0_11, %c0_12, %c0_13, %c0_14] : memref<1x1x4x128xf32, #tpu.memory_space<vmem>>, vector<1x1x4x128xf32>
    %24 = vector.shape_cast %23 : vector<1x1x4x128xf32> to vector<1x4x128xf32>
    %25 = vector.shape_cast %22 : vector<1x4x128xf32> to vector<1x1x4x128xf32>
    tpu.vector_store %arg4[%c0_11, %c0_12, %c0_13, %c0_14], %25 {strides = array<i32>} : memref<1x1x4x128xf32, #tpu.memory_space<vmem>>, vector<1x1x4x128xf32>,
    %26 = arith.mulf %18, %18 : vector<4x2x128xf32>
    %27 = arith.addf %26, %19 : vector<4x2x128xf32>
    %cst_15 = arith.constant dense<0.000000e+00> : vector<4x128xf32>
    %28 = vector.multi_reduction <add>, %27, %cst_15 [1] : vector<4x2x128xf32> to vector<4x128xf32>
    %29 = vector.shape_cast %28 : vector<4x128xf32> to vector<1x4x128xf32>
    %c0_16 = arith.constant 0 : index
    %c0_17 = arith.constant 0 : index
    %c0_18 = arith.constant 0 : index
    %c0_19 = arith.constant 0 : index
    %30 = vector.load %arg5[%c0_16, %c0_17, %c0_18, %c0_19] : memref<1x1x4x128xf32, #tpu.memory_space<vmem>>, vector<1x1x4x128xf32>
    %31 = vector.shape_cast %30 : vector<1x1x4x128xf32> to vector<1x4x128xf32>
    %32 = vector.shape_cast %29 : vector<1x4x128xf32> to vector<1x1x4x128xf32>
    tpu.vector_store %arg5[%c0_16, %c0_17, %c0_18, %c0_19], %32 {strides = array<i32>} : memref<1x1x4x128xf32, #tpu.memory_space<vmem>>, vector<1x1x4x128xf32>,
    %cst_20 = arith.constant 0.000000e+00 : f32
    %33 = vector.broadcast %cst_20 : f32 to vector<4x2x128xf32>
    %34 = arith.maximumf %1, %33 : vector<4x2x128xf32>
    %35 = arith.mulf %1, %3 : vector<4x2x128xf32>
    %36 = arith.subf %34, %35 : vector<4x2x128xf32>
    %37 = math.log1p %7 : vector<4x2x128xf32>
    %38 = arith.addf %36, %37 : vector<4x2x128xf32>
    %cst_21 = arith.constant dense<0.000000e+00> : vector<4x128xf32>
    %39 = vector.multi_reduction <add>, %38, %cst_21 [1] : vector<4x2x128xf32> to vector<4x128xf32>
    %40 = vector.shape_cast %39 : vector<4x128xf32> to vector<1x4x128xf32>
    %c0_22 = arith.constant 0 : index
    %c0_23 = arith.constant 0 : index
    %c0_24 = arith.constant 0 : index
    %c0_25 = arith.constant 0 : index
    %41 = vector.load %arg6[%c0_22, %c0_23, %c0_24, %c0_25] : memref<1x1x4x128xf32, #tpu.memory_space<vmem>>, vector<1x1x4x128xf32>
    %42 = vector.shape_cast %41 : vector<1x1x4x128xf32> to vector<1x4x128xf32>
    %43 = vector.shape_cast %40 : vector<1x4x128xf32> to vector<1x1x4x128xf32>
    tpu.vector_store %arg6[%c0_22, %c0_23, %c0_24, %c0_25], %43 {strides = array<i32>} : memref<1x1x4x128xf32, #tpu.memory_space<vmem>>, vector<1x1x4x128xf32>,
    return
  }
  func.func @transform_0(%arg0: i32, %arg1: i32) -> (i32, i32, i32, i32) {
    %c0_i32 = arith.constant 0 : i32
    %c0_i32_0 = arith.constant 0 : i32
    %c0_i32_1 = arith.constant 0 : i32
    return %arg0, %c0_i32, %arg1, %c0_i32_0 : i32, i32, i32, i32
  }
  func.func @transform_1(%arg0: i32, %arg1: i32) -> (i32, i32, i32, i32) {
    %c0_i32 = arith.constant 0 : i32
    %c0_i32_0 = arith.constant 0 : i32
    %c0_i32_1 = arith.constant 0 : i32
    return %arg0, %c0_i32, %arg1, %c0_i32_0 : i32, i32, i32, i32
  }
  func.func @transform_2(%arg0: i32, %arg1: i32) -> (i32, i32, i32, i32) {
    %c0_i32 = arith.constant 0 : i32
    %c0_i32_0 = arith.constant 0 : i32
    %c0_i32_1 = arith.constant 0 : i32
    return %arg0, %arg1, %c0_i32, %c0_i32_0 : i32, i32, i32, i32
  }
  func.func @transform_3(%arg0: i32, %arg1: i32) -> (i32, i32, i32, i32) {
    %c0_i32 = arith.constant 0 : i32
    %c0_i32_0 = arith.constant 0 : i32
    %c0_i32_1 = arith.constant 0 : i32
    return %arg0, %arg1, %c0_i32, %c0_i32_0 : i32, i32, i32, i32
  }
  func.func @transform_4(%arg0: i32, %arg1: i32) -> (i32, i32, i32, i32) {
    %c0_i32 = arith.constant 0 : i32
    %c0_i32_0 = arith.constant 0 : i32
    %c0_i32_1 = arith.constant 0 : i32
    return %arg0, %arg1, %c0_i32, %c0_i32_0 : i32, i32, i32, i32
  }
}

</mosaic_0001>

<llo_original>
// kernel: tpu_custom_call.1
$region0: #{tpu_custom_call.1}
  #allocation0 [shape = 'u32[]', space=smem, size = 0x4, offset = 0x4, fixed_abs, tag = 'smem constant byte address 0x4 - core index']
  #allocation1 [shape = 'u32[144,128]{1,0:T(1,128)}', space=vmem, size = 0x12000, scoped, tag = 'internal scratch']
  %s0 = inlined_call_operand.hbm [shape: f32[2,4,2,128], index: 0, kind: input, shape index: {}]
  %s1 = inlined_call_operand.hbm [shape: f32[2,4,2,128], index: 1, kind: input, shape index: {}]
  %s2 = inlined_call_operand.hbm [shape: f32[2,1,4,128], index: 2, kind: output, shape index: {0}]
  %s3 = inlined_call_operand.hbm [shape: f32[2,1,4,128], index: 3, kind: output, shape index: {1}]
  %s4 = inlined_call_operand.hbm [shape: f32[2,1,4,128], index: 4, kind: output, shape index: {2}]
  %5 = xla_tuple %s2, %s3, %s4
  %s6 = sld [smem:[#allocation0]]
  $region65: #{tpu_custom_call.1} parent=0
    _
  %s8 = ssub.s32 1, %s6
  %s9 = scalar_select 0, %s8, %s6
  $region1: #{tpu_custom_call.1} parent=0
    #allocation2 [shape = 'u8[8192]{0}', space=vmem, size = 0x2000, scoped, tag = 'input window, operand 0']
    #allocation3 [shape = 's32[2]{0}', space=sflag, size = 0x8, scoped, tag = 'scoped memory for tpu_custom_call.1']
    #allocation4 [shape = 's32[2]{0}', space=sflag, size = 0x8, scoped, tag = 'scoped memory for tpu_custom_call.1']
    #allocation5 [shape = 'u8[8192]{0}', space=vmem, size = 0x2000, scoped, tag = 'input window, operand 1']
    #allocation6 [shape = 's32[2]{0}', space=sflag, size = 0x8, scoped, tag = 'scoped memory for tpu_custom_call.1']
    #allocation7 [shape = 'u8[4096]{0}', space=vmem, size = 0x1000, scoped, tag = 'output window, operand 0']
    #allocation8 [shape = 'u8[4096]{0}', space=vmem, size = 0x1000, scoped, tag = 'output window, operand 1']
    #allocation9 [shape = 's32[2]{0}', space=sflag, size = 0x8, scoped, tag = 'scoped memory for tpu_custom_call.1']
    #allocation10 [shape = 'u8[4096]{0}', space=vmem, size = 0x1000, scoped, tag = 'output window, operand 2']
    %10 = vsyncpa [#allocation3], 0
    %s11 = scalar_lea.sflag [#allocation3], 1
    %12 = vsyncpa %s11, 0
    %13 = vsyncpa [#allocation6], 0
    %s14 = scalar_lea.sflag [#allocation6], 1
    %15 = vsyncpa %s14, 0
    %16 = vsyncpa [#allocation4], 0
    %s17 = scalar_lea.sflag [#allocation4], 1
    %18 = vsyncpa %s17, 0
    %19 = vsyncpa [#allocation9], 0
    %s20 = scalar_lea.sflag [#allocation9], 1
    %21 = vsyncpa %s20, 0
    loop: start=0, step=1, limit=4
    $region2: #{tpu_custom_call.1} parent=1 // loop_pre_header
      _
    $region3: #{tpu_custom_call.1} parent=1 // loop_header
      %s23 = sphi 0, %s27
      %p24 = scmp.ge.s32.totalorder %s23, 4
      %s30 = sphi 0, %s42
      %s31 = sphi 0, %s38
      %s32 = sphi 0, %s30
      %s33 = sphi 0, %s31
      %s34 = sphi 0, %s32
      %s35 = sphi 0, %s33
      %s47 = sphi 0, %s49
      %s50 = sphi 0, %s47
      %s51 = sphi 0, %s50
      %s67 = sphi 0, %s51
      %s75 = sphi 0, %s77
      %s78 = sphi 0, %s75
      %s79 = sphi 0, %s78
      %s95 = sphi 0, %s79
      %s103 = sphi 0, %s105
      %s106 = sphi 0, %s103
      %s107 = sphi 0, %s106
      %s123 = sphi 0, %s107
      %s131 = sphi 0, %s133
      %s134 = sphi 0, %s131
      %s135 = sphi 0, %s134
      %s151 = sphi 0, %s135
      %s159 = sphi 0, %s161
      %s162 = sphi 0, %s159
      %s163 = sphi 0, %s162
      %s179 = sphi 0, %s163
    $region4: #{tpu_custom_call.1} parent=1 // loop_header_branch
      %26 = sbr.rel (%p24) target = $region8
    $region5: #{tpu_custom_call.1} parent=1 // loop_body
      %s28 = ssub.s32 %s23, 1
      %s29 = ssub.s32 %s23, 2
      %s36 = sadd.s32 1, %s31
      %p37 = scmp.ge.s32.totalorder %s36, 1
      %s38 = scalar_select %p37, 0, %s36
      %s39 = sadd.s32 1, %s30
      %s40 = scalar_select %p37, %s39, %s30
      %p41 = scmp.ge.s32.totalorder %s40, 2
      %s42 = scalar_select %p41, 0, %s40
      %s43 = ssub.s32 %s30, %s42
      %s44 = ssub.s32 %s31, %s38
      %s45 = sor.u32 %s43, %s44
      %p46 = scmp.eq.s32.totalorder %s45, 0
      %s48 = sadd.s32 %s47, 1
      %s49 = scalar_select %p46, %s47, %s48
      %p52 = pneg %p46
      %p53 = scmp.eq.s32.totalorder %s23, 1
      %p54 = por %p52, %p53
      %p55 = scmp.ne.s32.totalorder %s47, %s50
      %p56 = scmp.eq.s32.totalorder %s23, 0
      %p57 = por %p55, %p56
      %p58 = scmp.ne.s32.totalorder %s47, %s50
      %p59 = scmp.eq.s32.totalorder %s28, 1
      %p60 = por %p58, %p59
      %p61 = scmp.ne.s32.totalorder %s50, %s51
      %p62 = scmp.eq.s32.totalorder %s28, 0
      %p63 = por %p61, %p62
      %p64 = scmp.ne.s32.totalorder %s50, %s51
      %p65 = scmp.eq.s32.totalorder %s29, 1
      %p66 = por %p64, %p65
      %p68 = scmp.ne.s32.totalorder %s51, %s67
      %p69 = scmp.eq.s32.totalorder %s29, 0
      %p70 = por %p68, %p69
      %s71 = ssub.s32 %s30, %s42
      %s72 = ssub.s32 %s31, %s38
      %s73 = sor.u32 %s71, %s72
      %p74 = scmp.eq.s32.totalorder %s73, 0
      %s76 = sadd.s32 %s75, 1
      %s77 = scalar_select %p74, %s75, %s76
      %p80 = pneg %p74
      %p81 = scmp.eq.s32.totalorder %s23, 1
      %p82 = por %p80, %p81
      %p83 = scmp.ne.s32.totalorder %s75, %s78
      %p84 = scmp.eq.s32.totalorder %s23, 0
      %p85 = por %p83, %p84
      %p86 = scmp.ne.s32.totalorder %s75, %s78
      %p87 = scmp.eq.s32.totalorder %s28, 1
      %p88 = por %p86, %p87
      %p89 = scmp.ne.s32.totalorder %s78, %s79
      %p90 = scmp.eq.s32.totalorder %s28, 0
      %p91 = por %p89, %p90
      %p92 = scmp.ne.s32.totalorder %s78, %s79
      %p93 = scmp.eq.s32.totalorder %s29, 1
      %p94 = por %p92, %p93
      %p96 = scmp.ne.s32.totalorder %s79, %s95
      %p97 = scmp.eq.s32.totalorder %s29, 0
      %p98 = por %p96, %p97
      %s99 = ssub.s32 %s30, %s42
      %s100 = ssub.s32 %s31, %s38
      %s101 = sor.u32 %s99, %s100
      %p102 = scmp.eq.s32.totalorder %s101, 0
      %s104 = sadd.s32 %s103, 1
      %s105 = scalar_select %p102, %s103, %s104
      %p108 = pneg %p102
      %p109 = scmp.eq.s32.totalorder %s23, 1
      %p110 = por %p108, %p109
      %p111 = scmp.ne.s32.totalorder %s103, %s106
      %p112 = scmp.eq.s32.totalorder %s23, 0
      %p113 = por %p111, %p112
      %p114 = scmp.ne.s32.totalorder %s103, %s106
      %p115 = scmp.eq.s32.totalorder %s28, 1
      %p116 = por %p114, %p115
      %p117 = scmp.ne.s32.totalorder %s106, %s107
      %p118 = scmp.eq.s32.totalorder %s28, 0
      %p119 = por %p117, %p118
      %p120 = scmp.ne.s32.totalorder %s106, %s107
      %p121 = scmp.eq.s32.totalorder %s29, 1
      %p122 = por %p120, %p121
      %p124 = scmp.ne.s32.totalorder %s107, %s123
      %p125 = scmp.eq.s32.totalorder %s29, 0
      %p126 = por %p124, %p125
      %s127 = ssub.s32 %s30, %s42
      %s128 = ssub.s32 %s31, %s38
      %s129 = sor.u32 %s127, %s128
      %p130 = scmp.eq.s32.totalorder %s129, 0
      %s132 = sadd.s32 %s131, 1
      %s133 = scalar_select %p130, %s131, %s132
      %p136 = pneg %p130
      %p137 = scmp.eq.s32.totalorder %s23, 1
      %p138 = por %p136, %p137
      %p139 = scmp.ne.s32.totalorder %s131, %s134
      %p140 = scmp.eq.s32.totalorder %s23, 0
      %p141 = por %p139, %p140
      %p142 = scmp.ne.s32.totalorder %s131, %s134
      %p143 = scmp.eq.s32.totalorder %s28, 1
      %p144 = por %p142, %p143
      %p145 = scmp.ne.s32.totalorder %s134, %s135
      %p146 = scmp.eq.s32.totalorder %s28, 0
      %p147 = por %p145, %p146
      %p148 = scmp.ne.s32.totalorder %s134, %s135
      %p149 = scmp.eq.s32.totalorder %s29, 1
      %p150 = por %p148, %p149
      %p152 = scmp.ne.s32.totalorder %s135, %s151
      %p153 = scmp.eq.s32.totalorder %s29, 0
      %p154 = por %p152, %p153
      %s155 = ssub.s32 %s30, %s42
      %s156 = ssub.s32 %s31, %s38
      %s157 = sor.u32 %s155, %s156
      %p158 = scmp.eq.s32.totalorder %s157, 0
      %s160 = sadd.s32 %s159, 1
      %s161 = scalar_select %p158, %s159, %s160
      %p164 = pneg %p158
      %p165 = scmp.eq.s32.totalorder %s23, 1
      %p166 = por %p164, %p165
      %p167 = scmp.ne.s32.totalorder %s159, %s162
      %p168 = scmp.eq.s32.totalorder %s23, 0
      %p169 = por %p167, %p168
      %p170 = scmp.ne.s32.totalorder %s159, %s162
      %p171 = scmp.eq.s32.totalorder %s28, 1
      %p172 = por %p170, %p171
      %p173 = scmp.ne.s32.totalorder %s162, %s163
      %p174 = scmp.eq.s32.totalorder %s28, 0
      %p175 = por %p173, %p174
      %p176 = scmp.ne.s32.totalorder %s162, %s163
      %p177 = scmp.eq.s32.totalorder %s29, 1
      %p178 = por %p176, %p177
      %p180 = scmp.ne.s32.totalorder %s163, %s179
      %p181 = scmp.eq.s32.totalorder %s29, 0
      %p182 = por %p180, %p181
      %p183 = scmp.le.s32.totalorder 1, %s23
      %p184 = scmp.lt.s32.totalorder %s23, 3
      %p185 = pnand %p183, %p184
      %p186 = pneg %p185
      // Predicated region
      $region9: #{tpu_custom_call.1} parent=5 // pred_check
        _
      $region10: #{tpu_custom_call.1} parent=5 // pred_check_branch
        %188 = sbr.rel (%p185) target = $region12
      $region11: #{tpu_custom_call.1} parent=5 // pred_region
        %s189 = ssub.s32 %s23, 1
      $region12: #{tpu_custom_call.1} parent=5 // pred_fallthru
        _
      %p190 = scmp.lt.s32.totalorder %s23, 2
      // Predicated region
      $region13: #{tpu_custom_call.1} parent=5 // pred_check
        %p191 = pneg %p190
      $region14: #{tpu_custom_call.1} parent=5 // pred_check_branch
        %193 = sbr.rel (%p191) target = $region16
      $region15: #{tpu_custom_call.1} parent=5 // pred_region
        // Predicated region
        $region17: #{tpu_custom_call.1} parent=15 // pred_check
          %p194 = pneg %p57
        $region18: #{tpu_custom_call.1} parent=15 // pred_check_branch
          %196 = sbr.rel (%p194) target = $region20
        $region19: #{tpu_custom_call.1} parent=15 // pred_region
          %s197 = sand.u32 %s47, 1
          %s198 = scalar_lea.sflag [#allocation3], %s197
          %s199 = sand.u32 %s47, 1
          %s200 = smul.addr %s199, 8
          %s201 = scalar_lea.vmem [#allocation2], %s200
          %s203 = ssub.s32 128, 128
          %204 = vsyncadd %s198, %s203
          %s205 = smul.addr %s30, 4
          %s206 = sadd.s32 %s31, %s205
          %s207 = smul.addr %s206, 32
          %s208 = scalar_lea.hbm %s0, %s207
          %s209 = sshll.u32 %s201, 4
          %s210 = int_to_ptr.vmem [resolvable:$true] %s209
          %215 = dma.hbm_to_vmem [thread:$0]  %s208, 128, %s210, %s198, 32, 32, 2
        $region20: #{tpu_custom_call.1} parent=15 // pred_fallthru
          _
        // Predicated region
        $region21: #{tpu_custom_call.1} parent=15 // pred_check
          %p216 = pneg %p85
        $region22: #{tpu_custom_call.1} parent=15 // pred_check_branch
          %218 = sbr.rel (%p216) target = $region24
        $region23: #{tpu_custom_call.1} parent=15 // pred_region
          %s219 = sand.u32 %s75, 1
          %s220 = scalar_lea.sflag [#allocation6], %s219
          %s221 = sand.u32 %s75, 1
          %s222 = smul.addr %s221, 8
          %s223 = scalar_lea.vmem [#allocation5], %s222
          %s225 = ssub.s32 128, 128
          %226 = vsyncadd %s220, %s225
          %s227 = smul.addr %s30, 4
          %s228 = sadd.s32 %s31, %s227
          %s229 = smul.addr %s228, 32
          %s230 = scalar_lea.hbm %s1, %s229
          %s231 = sshll.u32 %s223, 4
          %s232 = int_to_ptr.vmem [resolvable:$true] %s231
          %237 = dma.hbm_to_vmem [thread:$0]  %s230, 128, %s232, %s220, 32, 32, 2
        $region24: #{tpu_custom_call.1} parent=15 // pred_fallthru
          _
      $region16: #{tpu_custom_call.1} parent=5 // pred_fallthru
        _
      %p238 = scmp.le.s32.totalorder 1, %s23
      %p239 = scmp.lt.s32.totalorder %s23, 3
      %p240 = pnand %p238, %p239
      %p241 = pneg %p240
      // Predicated region
      $region25: #{tpu_custom_call.1} parent=5 // pred_check
        _
      $region26: #{tpu_custom_call.1} parent=5 // pred_check_branch
        %243 = sbr.rel (%p240) target = $region28
      $region27: #{tpu_custom_call.1} parent=5 // pred_region
        %s244 = ssub.s32 %s23, 1
        %s245 = sand.u32 %s50, 1
        %s246 = scalar_lea.sflag [#allocation3], %s245
        %s247 = sand.u32 %s50, 1
        %s248 = smul.addr %s247, 8
        %s249 = scalar_lea.vmem [#allocation2], %s248
        // Predicated region
        $region29: #{tpu_custom_call.1} parent=27 // pred_check
          %p250 = pneg %p63
        $region30: #{tpu_custom_call.1} parent=27 // pred_check_branch
          %252 = sbr.rel (%p250) target = $region32
        $region31: #{tpu_custom_call.1} parent=27 // pred_region
          %253 = dma.done %s246, 128
        $region32: #{tpu_custom_call.1} parent=27 // pred_fallthru
          _
        %s254 = sand.u32 %s78, 1
        %s255 = scalar_lea.sflag [#allocation6], %s254
        %s256 = sand.u32 %s78, 1
        %s257 = smul.addr %s256, 8
        %s258 = scalar_lea.vmem [#allocation5], %s257
        // Predicated region
        $region33: #{tpu_custom_call.1} parent=27 // pred_check
          %p259 = pneg %p91
        $region34: #{tpu_custom_call.1} parent=27 // pred_check_branch
          %261 = sbr.rel (%p259) target = $region36
        $region35: #{tpu_custom_call.1} parent=27 // pred_region
          %262 = dma.done %s255, 128
        $region36: #{tpu_custom_call.1} parent=27 // pred_fallthru
          _
        %s263 = sand.u32 %s50, 1
        %s264 = scalar_lea.sflag [#allocation3], %s263
        %s265 = sand.u32 %s50, 1
        %s266 = smul.addr %s265, 8
        %s267 = scalar_lea.vmem [#allocation2], %s266
        %p268 = pneg %p63
        %p269 = pneg %p60
        %s270 = sand.u32 %s78, 1
        %s271 = scalar_lea.sflag [#allocation6], %s270
        %s272 = sand.u32 %s78, 1
        %s273 = smul.addr %s272, 8
        %s274 = scalar_lea.vmem [#allocation5], %s273
        %p275 = pneg %p91
        %p276 = pneg %p88
        %p277 = pneg %p119
        %p278 = pneg %p116
        %s279 = sand.u32 %s106, 1
        %s280 = scalar_lea.sflag [#allocation4], %s279
        %s281 = sand.u32 %s106, 1
        %s282 = smul.addr %s281, 4
        %s283 = scalar_lea.vmem [#allocation7], %s282
        %p284 = pneg %p147
        %p285 = pneg %p144
        %s286 = sand.u32 %s28, 1
        %s287 = scalar_lea.sflag [#allocation9], %s286
        %s288 = sand.u32 %s134, 1
        %s289 = smul.addr %s288, 4
        %s290 = scalar_lea.vmem [#allocation8], %s289
        %p291 = pneg %p175
        %p292 = pneg %p172
        %s293 = sand.u32 %s28, 1
        %s294 = scalar_lea.sflag [#allocation9], %s293
        %s295 = sand.u32 %s162, 1
        %s296 = smul.addr %s295, 4
        %s297 = scalar_lea.vmem [#allocation10], %s296
        %v298 = vld [vmem:[%s249] sm:$0x3]
        %v299 = vld [vmem:[%s249 + $0x2] sm:$0x3]
        %v300 = vld [vmem:[%s249 + $0x4] sm:$0x3]
        %v301 = vld [vmem:[%s249 + $0x6] sm:$0x3]
        %v302 = vld [vmem:[%s258] sm:$0x3]
        %v303 = vld [vmem:[%s258 + $0x2] sm:$0x3]
        %v304 = vld [vmem:[%s258 + $0x4] sm:$0x3]
        %v305 = vld [vmem:[%s258 + $0x6] sm:$0x3]
        %v306 = vand.u32 2147483647, %v298
        %v307 = vand.u32 2147483647, %v299
        %v308 = vand.u32 2147483647, %v300
        %v309 = vand.u32 2147483647, %v301
        %v310 = vsub.f32 0.0, %v306
        %v311 = vsub.f32 0.0, %v307
        %v312 = vsub.f32 0.0, %v308
        %v313 = vsub.f32 0.0, %v309
        %v314 = vmul.f32 %v310, 1.442695
        %v315 = vpow.pop %v314
        %v316 = vmul.f32 %v311, 1.442695
        %v317 = vpow.pop %v316
        %v318 = vmul.f32 %v312, 1.442695
        %v319 = vpow.pop %v318
        %v320 = vmul.f32 %v313, 1.442695
        %v321 = vpow.pop %v320
        %v322 = vadd.f32 %v315, 1.0
        %v323 = vadd.f32 %v317, 1.0
        %v324 = vadd.f32 %v319, 1.0
        %v325 = vadd.f32 %v321, 1.0
        %v326 = vrcp.pop %v322
        %v327 = vrcp.pop %v323
        %v328 = vrcp.pop %v324
        %v329 = vrcp.pop %v325
        %v330 = vmul.f32 %v322, %v326
        %v331 = vmul.f32 %v323, %v327
        %v332 = vmul.f32 %v324, %v328
        %v333 = vmul.f32 %v325, %v329
        %v334 = vsub.f32 2.0, %v330
        %v335 = vsub.f32 2.0, %v331
        %v336 = vsub.f32 2.0, %v332
        %v337 = vsub.f32 2.0, %v333
        %v338 = vmul.f32 %v326, %v334
        %v339 = vmul.f32 %v327, %v335
        %v340 = vmul.f32 %v328, %v336
        %v341 = vmul.f32 %v329, %v337
        %vm342 = vcmp.ge.f32.partialorder %v298, 0.0
        %vm343 = vcmp.ge.f32.partialorder %v299, 0.0
        %vm344 = vcmp.ge.f32.partialorder %v300, 0.0
        %vm345 = vcmp.ge.f32.partialorder %v301, 0.0
        %v346 = vmul.f32 %v315, %v338
        %v347 = vmul.f32 %v317, %v339
        %v348 = vmul.f32 %v319, %v340
        %v349 = vmul.f32 %v321, %v341
        %v350 = vsel %vm342, %v338, %v346
        %v351 = vsel %vm343, %v339, %v347
        %v352 = vsel %vm344, %v340, %v348
        %v353 = vsel %vm345, %v341, %v349
        %v354 = vmul.f32 %v302, %v302
        %v355 = vmul.f32 %v303, %v303
        %v356 = vmul.f32 %v304, %v304
        %v357 = vmul.f32 %v305, %v305
        %v358 = vmul.f32 %v350, %v302
        %v359 = vmul.f32 %v351, %v303
        %v360 = vmul.f32 %v352, %v304
        %v361 = vmul.f32 %v353, %v305
        %vm362 = vcmask 1041408
        %v363 = vsel %vm362, %v358, 0.0
        %v364 = vrot.slane %v363, 4
        %v365 = vadd.f32 %v363, %v364
        %v366 = vrot.slane %v365, 2
        %v367 = vadd.f32 %v365, %v366
        %v368 = vrot.slane %v367, 1
        %v369 = vadd.f32 %v367, %v368
        %v370 = vsel %vm362, %v359, 0.0
        %v371 = vrot.slane %v370, 4
        %v372 = vadd.f32 %v370, %v371
        %v373 = vrot.slane %v372, 2
        %v374 = vadd.f32 %v372, %v373
        %v375 = vrot.slane %v374, 1
        %v376 = vadd.f32 %v374, %v375
        %v377 = vsel %vm362, %v360, 0.0
        %v378 = vrot.slane %v377, 4
        %v379 = vadd.f32 %v377, %v378
        %v380 = vrot.slane %v379, 2
        %v381 = vadd.f32 %v379, %v380
        %v382 = vrot.slane %v381, 1
        %v383 = vadd.f32 %v381, %v382
        %v384 = vsel %vm362, %v361, 0.0
        %v385 = vrot.slane %v384, 4
        %v386 = vadd.f32 %v384, %v385
        %v387 = vrot.slane %v386, 2
        %v388 = vadd.f32 %v386, %v387
        %v389 = vrot.slane %v388, 1
        %v390 = vadd.f32 %v388, %v389
        %vm395 = vcmask 1041409
        %v396 = vsel %vm395, %v376, %v369
        %vm397 = vcmask 1042434
        %v398 = vsel %vm397, %v383, %v396
        %vm399 = vcmask 1043459
        %v400 = vsel %vm399, %v390, %v398
        %402 = vst [vmem:[%s283] sm:$0xf] %v400
        %v403 = vmul.f32 %v350, %v350
        %v404 = vmul.f32 %v351, %v351
        %v405 = vmul.f32 %v352, %v352
        %v406 = vmul.f32 %v353, %v353
        %v407 = vadd.f32 %v403, %v354
        %v408 = vadd.f32 %v404, %v355
        %v409 = vadd.f32 %v405, %v356
        %v410 = vadd.f32 %v406, %v357
        %v411 = vsel %vm362, %v407, 0.0
        %v412 = vrot.slane %v411, 4
        %v413 = vadd.f32 %v411, %v412
        %v414 = vrot.slane %v413, 2
        %v415 = vadd.f32 %v413, %v414
        %v416 = vrot.slane %v415, 1
        %v417 = vadd.f32 %v415, %v416
        %v418 = vsel %vm362, %v408, 0.0
        %v419 = vrot.slane %v418, 4
        %v420 = vadd.f32 %v418, %v419
        %v421 = vrot.slane %v420, 2
        %v422 = vadd.f32 %v420, %v421
        %v423 = vrot.slane %v422, 1
        %v424 = vadd.f32 %v422, %v423
        %v425 = vsel %vm362, %v409, 0.0
        %v426 = vrot.slane %v425, 4
        %v427 = vadd.f32 %v425, %v426
        %v428 = vrot.slane %v427, 2
        %v429 = vadd.f32 %v427, %v428
        %v430 = vrot.slane %v429, 1
        %v431 = vadd.f32 %v429, %v430
        %v432 = vsel %vm362, %v410, 0.0
        %v433 = vrot.slane %v432, 4
        %v434 = vadd.f32 %v432, %v433
        %v435 = vrot.slane %v434, 2
        %v436 = vadd.f32 %v434, %v435
        %v437 = vrot.slane %v436, 1
        %v438 = vadd.f32 %v436, %v437
        %v443 = vsel %vm395, %v424, %v417
        %v444 = vsel %vm397, %v431, %v443
        %v445 = vsel %vm399, %v438, %v444
        %447 = vst [vmem:[%s290] sm:$0xf] %v445
        %v448 = vmax.f32 %v298, 0.0
        %v449 = vmax.f32 %v299, 0.0
        %v450 = vmax.f32 %v300, 0.0
        %v451 = vmax.f32 %v301, 0.0
        %v452 = vmul.f32 %v298, %v302
        %v453 = vmul.f32 %v299, %v303
        %v454 = vmul.f32 %v300, %v304
        %v455 = vmul.f32 %v301, %v305
        %v456 = vsub.f32 %v448, %v452
        %v457 = vsub.f32 %v449, %v453
        %v458 = vsub.f32 %v450, %v454
        %v459 = vsub.f32 %v451, %v455
        %v460 = vadd.f32 %v315, 1.0
        %v461 = vlog2.pop %v460
        %v462 = vmul.f32 %v461, 0.6931472
        %v463 = vmul.f32 -0.5, %v315
        %v464 = vadd.f32 %v463, 1.0
        %v465 = vmul.f32 %v464, %v315
        %v466 = vand.u32 2147483647, %v315
        %vm467 = vcmp.lt.f32.partialorder %v466, 0.0004427343
        %v468 = vsel %vm467, %v465, %v462
        %v469 = vadd.f32 %v317, 1.0
        %v470 = vlog2.pop %v469
        %v471 = vmul.f32 %v470, 0.6931472
        %v472 = vmul.f32 -0.5, %v317
        %v473 = vadd.f32 %v472, 1.0
        %v474 = vmul.f32 %v473, %v317
        %v475 = vand.u32 2147483647, %v317
        %vm476 = vcmp.lt.f32.partialorder %v475, 0.0004427343
        %v477 = vsel %vm476, %v474, %v471
        %v478 = vadd.f32 %v319, 1.0
        %v479 = vlog2.pop %v478
        %v480 = vmul.f32 %v479, 0.6931472
        %v481 = vmul.f32 -0.5, %v319
        %v482 = vadd.f32 %v481, 1.0
        %v483 = vmul.f32 %v482, %v319
        %v484 = vand.u32 2147483647, %v319
        %vm485 = vcmp.lt.f32.partialorder %v484, 0.0004427343
        %v486 = vsel %vm485, %v483, %v480
        %v487 = vadd.f32 %v321, 1.0
        %v488 = vlog2.pop %v487
        %v489 = vmul.f32 %v488, 0.6931472
        %v490 = vmul.f32 -0.5, %v321
        %v491 = vadd.f32 %v490, 1.0
        %v492 = vmul.f32 %v491, %v321
        %v493 = vand.u32 2147483647, %v321
        %vm494 = vcmp.lt.f32.partialorder %v493, 0.0004427343
        %v495 = vsel %vm494, %v492, %v489
        %v496 = vadd.f32 %v456, %v468
        %v497 = vadd.f32 %v457, %v477
        %v498 = vadd.f32 %v458, %v486
        %v499 = vadd.f32 %v459, %v495
        %v500 = vsel %vm362, %v496, 0.0
        %v501 = vrot.slane %v500, 4
        %v502 = vadd.f32 %v500, %v501
        %v503 = vrot.slane %v502, 2
        %v504 = vadd.f32 %v502, %v503
        %v505 = vrot.slane %v504, 1
        %v506 = vadd.f32 %v504, %v505
        %v507 = vsel %vm362, %v497, 0.0
        %v508 = vrot.slane %v507, 4
        %v509 = vadd.f32 %v507, %v508
        %v510 = vrot.slane %v509, 2
        %v511 = vadd.f32 %v509, %v510
        %v512 = vrot.slane %v511, 1
        %v513 = vadd.f32 %v511, %v512
        %v514 = vsel %vm362, %v498, 0.0
        %v515 = vrot.slane %v514, 4
        %v516 = vadd.f32 %v514, %v515
        %v517 = vrot.slane %v516, 2
        %v518 = vadd.f32 %v516, %v517
        %v519 = vrot.slane %v518, 1
        %v520 = vadd.f32 %v518, %v519
        %v521 = vsel %vm362, %v499, 0.0
        %v522 = vrot.slane %v521, 4
        %v523 = vadd.f32 %v521, %v522
        %v524 = vrot.slane %v523, 2
        %v525 = vadd.f32 %v523, %v524
        %v526 = vrot.slane %v525, 1
        %v527 = vadd.f32 %v525, %v526
        %v532 = vsel %vm395, %v513, %v506
        %v533 = vsel %vm397, %v520, %v532
        %v534 = vsel %vm399, %v527, %v533
        %536 = vst [vmem:[%s297] sm:$0xf] %v534
        %s537 = sand.u32 %s106, 1
        %s538 = scalar_lea.sflag [#allocation4], %s537
        %s539 = sand.u32 %s106, 1
        %s540 = smul.addr %s539, 4
        %s541 = scalar_lea.vmem [#allocation7], %s540
        %s542 = sand.u32 %s28, 1
        %s543 = scalar_lea.sflag [#allocation9], %s542
        %s544 = sand.u32 %s134, 1
        %s545 = smul.addr %s544, 4
        %s546 = scalar_lea.vmem [#allocation8], %s545
        %s547 = sand.u32 %s28, 1
        %s548 = scalar_lea.sflag [#allocation9], %s547
        %s549 = sand.u32 %s162, 1
        %s550 = smul.addr %s549, 4
        %s551 = scalar_lea.vmem [#allocation10], %s550
        // Predicated region
        $region37: #{tpu_custom_call.1} parent=27 // pred_check
          %p552 = pneg %p116
        $region38: #{tpu_custom_call.1} parent=27 // pred_check_branch
          %554 = sbr.rel (%p552) target = $region40
        $region39: #{tpu_custom_call.1} parent=27 // pred_region
          %s556 = ssub.s32 64, 64
          %557 = vsyncadd %s538, %s556
          %s558 = sadd.s32 %s33, %s32
          %s559 = smul.addr %s558, 64
          %s560 = scalar_lea.hbm %s2, %s559
          %s562 = sshll.u32 %s541, 4
          %s563 = int_to_ptr.vmem [resolvable:$true] %s562
          %565 = dma.vmem_to_hbm [thread:$0]  %s563, 64, %s560, %s538
        $region40: #{tpu_custom_call.1} parent=27 // pred_fallthru
          _
        // Predicated region
        $region41: #{tpu_custom_call.1} parent=27 // pred_check
          %p566 = pneg %p144
        $region42: #{tpu_custom_call.1} parent=27 // pred_check_branch
          %568 = sbr.rel (%p566) target = $region44
        $region43: #{tpu_custom_call.1} parent=27 // pred_region
          %s570 = ssub.s32 64, 64
          %571 = vsyncadd %s543, %s570
          %s572 = sadd.s32 %s33, %s32
          %s573 = smul.addr %s572, 64
          %s574 = scalar_lea.hbm %s3, %s573
          %s576 = sshll.u32 %s546, 4
          %s577 = int_to_ptr.vmem [resolvable:$true] %s576
          %579 = dma.vmem_to_hbm [thread:$0]  %s577, 64, %s574, %s543
        $region44: #{tpu_custom_call.1} parent=27 // pred_fallthru
          _
        // Predicated region
        $region45: #{tpu_custom_call.1} parent=27 // pred_check
          %p580 = pneg %p172
        $region46: #{tpu_custom_call.1} parent=27 // pred_check_branch
          %582 = sbr.rel (%p580) target = $region48
        $region47: #{tpu_custom_call.1} parent=27 // pred_region
          %s584 = ssub.s32 64, 64
          %585 = vsyncadd %s548, %s584
          %s586 = sadd.s32 %s33, %s32
          %s587 = smul.addr %s586, 64
          %s588 = scalar_lea.hbm %s4, %s587
          %s590 = sshll.u32 %s551, 4
          %s591 = int_to_ptr.vmem [resolvable:$true] %s590
          %593 = dma.vmem_to_hbm [thread:$0]  %s591, 64, %s588, %s548
        $region48: #{tpu_custom_call.1} parent=27 // pred_fallthru
          _
      $region28: #{tpu_custom_call.1} parent=5 // pred_fallthru
        _
      %p594 = scmp.le.s32.totalorder 2, %s23
      // Predicated region
      $region49: #{tpu_custom_call.1} parent=5 // pred_check
        %p595 = pneg %p594
      $region50: #{tpu_custom_call.1} parent=5 // pred_check_branch
        %597 = sbr.rel (%p595) target = $region52
      $region51: #{tpu_custom_call.1} parent=5 // pred_region
        %s598 = ssub.s32 %s23, 2
        // Predicated region
        $region53: #{tpu_custom_call.1} parent=51 // pred_check
          %p599 = pneg %p122
        $region54: #{tpu_custom_call.1} parent=51 // pred_check_branch
          %601 = sbr.rel (%p599) target = $region56
        $region55: #{tpu_custom_call.1} parent=51 // pred_region
          %s602 = sand.u32 %s107, 1
          %s603 = scalar_lea.sflag [#allocation4], %s602
          %s604 = sand.u32 %s107, 1
          %s605 = smul.addr %s604, 4
          %s606 = scalar_lea.vmem [#allocation7], %s605
          %607 = dma.done %s603, 64
        $region56: #{tpu_custom_call.1} parent=51 // pred_fallthru
          _
        // Predicated region
        $region57: #{tpu_custom_call.1} parent=51 // pred_check
          %p608 = pneg %p150
        $region58: #{tpu_custom_call.1} parent=51 // pred_check_branch
          %610 = sbr.rel (%p608) target = $region60
        $region59: #{tpu_custom_call.1} parent=51 // pred_region
          %s611 = sand.u32 %s29, 1
          %s612 = scalar_lea.sflag [#allocation9], %s611
          %s613 = sand.u32 %s135, 1
          %s614 = smul.addr %s613, 4
          %s615 = scalar_lea.vmem [#allocation8], %s614
          %616 = dma.done %s612, 64
        $region60: #{tpu_custom_call.1} parent=51 // pred_fallthru
          _
        // Predicated region
        $region61: #{tpu_custom_call.1} parent=51 // pred_check
          %p617 = pneg %p178
        $region62: #{tpu_custom_call.1} parent=51 // pred_check_branch
          %619 = sbr.rel (%p617) target = $region64
        $region63: #{tpu_custom_call.1} parent=51 // pred_region
          %s620 = sand.u32 %s29, 1
          %s621 = scalar_lea.sflag [#allocation9], %s620
          %s622 = sand.u32 %s163, 1
          %s623 = smul.addr %s622, 4
          %s624 = scalar_lea.vmem [#allocation10], %s623
          %625 = dma.done %s621, 64
        $region64: #{tpu_custom_call.1} parent=51 // pred_fallthru
          _
      $region52: #{tpu_custom_call.1} parent=5 // pred_fallthru
        _
    $region6: #{tpu_custom_call.1} parent=1 // loop_footer
      %s27 = sadd.s32 1, %s23
    $region7: #{tpu_custom_call.1} parent=1 // loop_footer_branch
      %22 = sbr.rel target = $region3
    $region8: #{tpu_custom_call.1} parent=1 // loop_exit
      _
    %626 = vsyncpa [#allocation3], 1
    %s627 = scalar_lea.sflag [#allocation3], 1
    %628 = vsyncpa %s627, 1
    %629 = vsyncpa [#allocation6], 1
    %s630 = scalar_lea.sflag [#allocation6], 1
    %631 = vsyncpa %s630, 1
    %632 = vsyncpa [#allocation4], 1
    %s633 = scalar_lea.sflag [#allocation4], 1
    %634 = vsyncpa %s633, 1
    %635 = vsyncpa [#allocation9], 1
    %s636 = scalar_lea.sflag [#allocation9], 1
    %637 = vsyncpa %s636, 1

</llo_original>
